<compile_context>
chip_gen: v7x
topology: tpu7x:2x2x1
jax: 0.10.0
libtpu: 0.0.40
codegen_flags: <defaults>
</compile_context>

<pallas_src>
import jax
import jax.numpy as jnp
from jax.experimental import pallas as pl
from jax.experimental.pallas import tpu as pltpu


def rtdetr_forward(images, orig_target_sizes, params, num_top_queries=4):
    """images: (B, Cin, H, W) NCHW float32; orig_target_sizes: (B, 2) [w, h]."""
    w1, qmix, wcls, bcls, wbox, bbox = params
    B, Cin, H, W = images.shape
    HW = H * W
    D = w1.shape[1]
    nq = qmix.shape[0]
    C = wcls.shape[1]

    # ---- fused, lane-dense head: columns [0:C] = classes, [C:C+4] = box ----
    C_pad = max(128, ((C + 4 + 127) // 128) * 128)
    w_head = (jnp.zeros((D, C_pad), jnp.float32)
              .at[:, :C].set(wcls)
              .at[:, C:C + 4].set(wbox))
    b_head = (jnp.zeros((1, C_pad), jnp.float32)
              .at[:, :C].set(bcls)
              .at[:, C:C + 4].set(bbox))

    # ---- layouts (all cheap wrapper glue) ----
    x_chw = images.reshape(B, Cin, HW)            # HW on the lane axis, no transpose
    w1t = jnp.transpose(w1)                       # (D, Cin) for the VPU stem
    qmix_bf = qmix.astype(jnp.bfloat16)           # bf16 MXU inputs, f32 accumulate
    w_head_bf = w_head.astype(jnp.bfloat16)
    scale = orig_target_sizes.astype(jnp.float32)  # (B, 2) [w, h], lives in SMEM

    # ---- HW (reduction) tiling ----
    if HW % 512 == 0:
        T_HW = 512
    elif HW % 128 == 0:
        T_HW = 128
    else:
        T_HW = HW
    n_k = HW // T_HW

    def fused_kernel(scale_ref, x_ref, w1t_ref, qmix_ref, wh_ref, bh_ref,
                     scores_ref, boxes_ref, q_acc):
        b = pl.program_id(0)
        k = pl.program_id(1)

        @pl.when(k == 0)
        def _():
            q_acc[...] = jnp.zeros_like(q_acc)

        # --- 1x1-conv stem on the VPU: h^T(D, T_HW) = sum_c w1^T[:, c] x[c, :] ---
        x = x_ref[0]                              # (Cin, T_HW) f32
        w1t_v = w1t_ref[...]                      # (D, Cin)    f32
        cin = w1t_v.shape[1]
        h = w1t_v[:, 0:1] * x[0:1, :]
        for c in range(1, cin):                   # Cin is tiny and static
            h = h + w1t_v[:, c:c + 1] * x[c:c + 1, :]
        h = jnp.maximum(h, 0.0)                   # ReLU in f32 (VPU)

        # --- query mixing partial sum on the MXU (bf16 in, f32 accumulate) ---
        # qmix tile (nq, T_HW) . h^T (D, T_HW), contracting over T_HW -> (nq, D)
        q_acc[...] += jax.lax.dot_general(
            qmix_ref[...], h.astype(jnp.bfloat16),
            dimension_numbers=(((1,), (1,)), ((), ())),
            preferred_element_type=jnp.float32)

        # --- epilogue: fused heads + RT-DETR postprocessing, last HW tile only ---
        @pl.when(k == pl.num_programs(1) - 1)
        def _():
            q = q_acc[...].astype(jnp.bfloat16)   # (nq, D)
            head = jnp.dot(q, wh_ref[...],
                           preferred_element_type=jnp.float32) + bh_ref[...]
            s = jax.nn.sigmoid(head)              # (nq, C_pad) f32
            scores_ref[0] = s                     # lane-dense full-width store

            # box columns [C:C+4] hold sigmoid(cxcywh); cxcywh -> xyxy on the VPU
            cx = s[:, C + 0:C + 1]
            cy = s[:, C + 1:C + 2]
            bw = s[:, C + 2:C + 3]
            bh_ = s[:, C + 3:C + 4]
            sw = scale_ref[b, 0]                  # scalar reads from SMEM
            sh = scale_ref[b, 1]
            x1 = (cx - 0.5 * bw) * sw
            y1 = (cy - 0.5 * bh_) * sh
            x2 = (cx + 0.5 * bw) * sw
            y2 = (cy + 0.5 * bh_) * sh
            boxes_ref[0] = jnp.concatenate([x1, y1, x2, y2], axis=-1)

        del b  # (b only used in epilogue)

    scores_p, boxes_xyxy = pl.pallas_call(
        fused_kernel,
        out_shape=(jax.ShapeDtypeStruct((B, nq, C_pad), jnp.float32),
                   jax.ShapeDtypeStruct((B, nq, 4), jnp.float32)),
        grid=(B, n_k),
        in_specs=[
            pl.BlockSpec(memory_space=pltpu.MemorySpace.SMEM),       # scale (B, 2)
            pl.BlockSpec((1, Cin, T_HW), lambda b, k: (b, 0, k)),    # x
            pl.BlockSpec((D, Cin), lambda b, k: (0, 0)),             # w1^T
            pl.BlockSpec((nq, T_HW), lambda b, k: (0, k)),           # qmix (bf16)
            pl.BlockSpec((D, C_pad), lambda b, k: (0, 0)),           # fused head W
            pl.BlockSpec((1, C_pad), lambda b, k: (0, 0)),           # fused head b
        ],
        out_specs=(pl.BlockSpec((1, nq, C_pad), lambda b, k: (b, 0, 0)),
                   pl.BlockSpec((1, nq, 4), lambda b, k: (b, 0, 0))),
        scratch_shapes=[pltpu.VMEM((nq, D), jnp.float32)],
        compiler_params=pltpu.CompilerParams(
            dimension_semantics=("parallel", "arbitrary"),
            vmem_limit_bytes=32 * 1024 * 1024),
    )(scale, x_chw, w1t, qmix_bf, w_head_bf, b_head)

    # ---- RT-DETR deploy top-k over flattened (queries * classes) (glue) ----
    scores = scores_p[:, :, :C]
    scores_flat = scores.reshape(B, nq * C)
    top_scores, top_idx = jax.lax.top_k(scores_flat, num_top_queries)
    labels = top_idx % C
    q_idx = top_idx // C
    top_boxes = jnp.take_along_axis(boxes_xyxy, q_idx[..., None], axis=1)  # (B, K, 4)
    return labels, top_boxes, top_scores


def init_params(key, Cin, HW, D, nq, C):
    ks = jax.random.split(key, 6)
    s = 0.1
    w1 = s * jax.random.normal(ks[0], (Cin, D), jnp.float32)
    qmix = s * jax.random.normal(ks[1], (nq, HW), jnp.float32)
    wcls = s * jax.random.normal(ks[2], (D, C), jnp.float32)
    bcls = jnp.zeros((1, C), jnp.float32)
    wbox = s * jax.random.normal(ks[3], (D, 4), jnp.float32)
    bbox = jnp.zeros((1, 4), jnp.float32)
    return (w1, qmix, wcls, bcls, wbox, bbox)


if __name__ == "__main__":
    B, Cin, H, W = 2, 3, 16, 16
    D, nq, C = 32, 8, 16
    HW = H * W

    key = jax.random.PRNGKey(0)
    k_img, k_par = jax.random.split(key)
    images = jax.random.uniform(k_img, (B, Cin, H, W), jnp.float32)
    orig_target_sizes = jnp.array([[640.0, 480.0], [320.0, 320.0]], jnp.float32)
    params = init_params(k_par, Cin, HW, D, nq, C)

    labels, boxes, scores = jax.jit(
        lambda im, sz: rtdetr_forward(im, sz, params, num_top_queries=4)
    )(images, orig_target_sizes)
    jax.block_until_ready((labels, boxes, scores))

    assert labels.shape == (B, 4) and boxes.shape == (B, 4, 4) and scores.shape == (B, 4)
    print("KERNEL_OK")
</pallas_src>

<mosaic_0001>
module attributes {stable_mosaic.version = 11 : i64} {
  func.func @fused_kernel(%arg0: i32, %arg1: i32, %arg2: memref<2x2xf32, #tpu.memory_space<smem>>, %arg3: memref<1x3x128xf32, #tpu.memory_space<vmem>>, %arg4: memref<32x3xf32, #tpu.memory_space<vmem>>, %arg5: memref<8x128xbf16, #tpu.memory_space<vmem>>, %arg6: memref<32x128xbf16, #tpu.memory_space<vmem>>, %arg7: memref<1x128xf32, #tpu.memory_space<vmem>>, %arg8: memref<1x8x128xf32, #tpu.memory_space<vmem>>, %arg9: memref<1x8x4xf32, #tpu.memory_space<vmem>>, %arg10: memref<8x32xf32, #tpu.memory_space<vmem>>) attributes {dimension_semantics = [#tpu.dimension_semantics<parallel>, #tpu.dimension_semantics<arbitrary>], iteration_bounds = array<i64: 2, 2>, scalar_prefetch = 0 : i64, scratch_operands = 1 : i64, tpu.core_type = #tpu.core_type<tc>, window_params = [{transform_indices = @transform_0, window_bounds = array<i64: 2, 2>}, {transform_indices = @transform_1, window_bounds = array<i64: 1, 3, 128>}, {pipeline_mode = #tpu.pipeline_mode<synchronous>, transform_indices = @transform_2, window_bounds = array<i64: 32, 3>}, {transform_indices = @transform_3, window_bounds = array<i64: 8, 128>}, {pipeline_mode = #tpu.pipeline_mode<synchronous>, transform_indices = @transform_4, window_bounds = array<i64: 32, 128>}, {pipeline_mode = #tpu.pipeline_mode<synchronous>, transform_indices = @transform_5, window_bounds = array<i64: 1, 128>}, {transform_indices = @transform_6, window_bounds = array<i64: 1, 8, 128>}, {transform_indices = @transform_7, window_bounds = array<i64: 1, 8, 4>}]} {
    %c0_i32 = arith.constant 0 : i32
    %0 = arith.cmpi eq, %arg1, %c0_i32 : i32
    %1 = arith.extui %0 : i1 to i32
    %c0_i32_0 = arith.constant 0 : i32
    %2 = arith.cmpi ne, %1, %c0_i32_0 : i32
    scf.if %2 {
      %cst_13 = arith.constant 0.000000e+00 : f32
      %34 = vector.broadcast %cst_13 : f32 to vector<8x32xf32>
      %c0_14 = arith.constant 0 : index
      %c0_15 = arith.constant 0 : index
      %35 = vector.load %arg10[%c0_14, %c0_15] : memref<8x32xf32, #tpu.memory_space<vmem>>, vector<8x32xf32>
      tpu.vector_store %arg10[%c0_14, %c0_15], %34 {strides = array<i32>} : memref<8x32xf32, #tpu.memory_space<vmem>>, vector<8x32xf32>,
    } else {
    }
    %c0 = arith.constant 0 : index
    %c0_1 = arith.constant 0 : index
    %c0_2 = arith.constant 0 : index
    %3 = vector.load %arg3[%c0, %c0_1, %c0_2] : memref<1x3x128xf32, #tpu.memory_space<vmem>>, vector<1x3x128xf32>
    %4 = vector.shape_cast %3 : vector<1x3x128xf32> to vector<3x128xf32>
    %c0_3 = arith.constant 0 : index
    %c0_4 = arith.constant 0 : index
    %5 = vector.load %arg4[%c0_3, %c0_4] : memref<32x3xf32, #tpu.memory_space<vmem>>, vector<32x3xf32>
    %6 = vector.extract_strided_slice %5 {offsets = [0, 0], sizes = [32, 1], strides = [1, 1]} : vector<32x3xf32> to vector<32x1xf32>
    %7 = vector.extract_strided_slice %4 {offsets = [0, 0], sizes = [1, 128], strides = [1, 1]} : vector<3x128xf32> to vector<1x128xf32>
    %8 = vector.broadcast %6 : vector<32x1xf32> to vector<32x128xf32>
    %9 = vector.broadcast %7 : vector<1x128xf32> to vector<32x128xf32>
    %10 = arith.mulf %8, %9 : vector<32x128xf32>
    %11 = vector.extract_strided_slice %5 {offsets = [0, 1], sizes = [32, 1], strides = [1, 1]} : vector<32x3xf32> to vector<32x1xf32>
    %12 = vector.extract_strided_slice %4 {offsets = [1, 0], sizes = [1, 128], strides = [1, 1]} : vector<3x128xf32> to vector<1x128xf32>
    %13 = vector.broadcast %11 : vector<32x1xf32> to vector<32x128xf32>
    %14 = vector.broadcast %12 : vector<1x128xf32> to vector<32x128xf32>
    %15 = arith.mulf %13, %14 : vector<32x128xf32>
    %16 = arith.addf %10, %15 : vector<32x128xf32>
    %17 = vector.extract_strided_slice %5 {offsets = [0, 2], sizes = [32, 1], strides = [1, 1]} : vector<32x3xf32> to vector<32x1xf32>
    %18 = vector.extract_strided_slice %4 {offsets = [2, 0], sizes = [1, 128], strides = [1, 1]} : vector<3x128xf32> to vector<1x128xf32>
    %19 = vector.broadcast %17 : vector<32x1xf32> to vector<32x128xf32>
    %20 = vector.broadcast %18 : vector<1x128xf32> to vector<32x128xf32>
    %21 = arith.mulf %19, %20 : vector<32x128xf32>
    %22 = arith.addf %16, %21 : vector<32x128xf32>
    %cst = arith.constant 0.000000e+00 : f32
    %23 = vector.broadcast %cst : f32 to vector<32x128xf32>
    %24 = arith.maximumf %22, %23 : vector<32x128xf32>
    %c0_5 = arith.constant 0 : index
    %c0_6 = arith.constant 0 : index
    %25 = vector.load %arg10[%c0_5, %c0_6] : memref<8x32xf32, #tpu.memory_space<vmem>>, vector<8x32xf32>
    %c0_7 = arith.constant 0 : index
    %c0_8 = arith.constant 0 : index
    %26 = vector.load %arg5[%c0_7, %c0_8] : memref<8x128xbf16, #tpu.memory_space<vmem>>, vector<8x128xbf16>
    %27 = arith.truncf %24 : vector<32x128xf32> to vector<32x128xbf16>
    %cst_9 = arith.constant dense<0.000000e+00> : vector<8x32xf32>
    %28 = tpu.matmul %26, %27, %cst_9 {dimension_numbers = #tpu.dot_dimension_numbers<[1], [1], [0], [0], [0, 0, 1, 0], [], []>} : vector<8x128xbf16>, vector<32x128xbf16>, vector<8x32xf32> -> vector<8x32xf32>
    %29 = arith.addf %25, %28 : vector<8x32xf32>
    %c0_10 = arith.constant 0 : index
    %c0_11 = arith.constant 0 : index
    %30 = vector.load %arg10[%c0_10, %c0_11] : memref<8x32xf32, #tpu.memory_space<vmem>>, vector<8x32xf32>
    tpu.vector_store %arg10[%c0_10, %c0_11], %29 {strides = array<i32>} : memref<8x32xf32, #tpu.memory_space<vmem>>, vector<8x32xf32>,
    %c1_i32 = arith.constant 1 : i32
    %31 = arith.cmpi eq, %arg1, %c1_i32 : i32
    %32 = arith.extui %31 : i1 to i32
    %c0_i32_12 = arith.constant 0 : i32
    %33 = arith.cmpi ne, %32, %c0_i32_12 : i32
    scf.if %33 {
      %c0_13 = arith.constant 0 : index
      %c0_14 = arith.constant 0 : index
      %34 = vector.load %arg10[%c0_13, %c0_14] : memref<8x32xf32, #tpu.memory_space<vmem>>, vector<8x32xf32>
      %35 = arith.truncf %34 : vector<8x32xf32> to vector<8x32xbf16>
      %c0_15 = arith.constant 0 : index
      %c0_16 = arith.constant 0 : index
      %36 = vector.load %arg6[%c0_15, %c0_16] : memref<32x128xbf16, #tpu.memory_space<vmem>>, vector<32x128xbf16>
      %cst_17 = arith.constant dense<0.000000e+00> : vector<8x128xf32>
      %37 = tpu.matmul %35, %36, %cst_17 {dimension_numbers = #tpu.dot_dimension_numbers<[1], [0], [0], [1], [0, 0, 1, 1], [], []>} : vector<8x32xbf16>, vector<32x128xbf16>, vector<8x128xf32> -> vector<8x128xf32>
      %c0_18 = arith.constant 0 : index
      %c0_19 = arith.constant 0 : index
      %38 = vector.load %arg7[%c0_18, %c0_19] : memref<1x128xf32, #tpu.memory_space<vmem>>, vector<1x128xf32>
      %39 = vector.broadcast %38 : vector<1x128xf32> to vector<8x128xf32>
      %40 = arith.addf %37, %39 : vector<8x128xf32>
      %41 = arith.negf %40 : vector<8x128xf32>
      %42 = math.exp %41 : vector<8x128xf32>
      %cst_20 = arith.constant 1.000000e+00 : f32
      %43 = vector.broadcast %cst_20 : f32 to vector<8x128xf32>
      %44 = arith.addf %43, %42 : vector<8x128xf32>
      %45 = arith.divf %43, %44 : vector<8x128xf32>
      %c0_21 = arith.constant 0 : index
      %c0_22 = arith.constant 0 : index
      %c0_23 = arith.constant 0 : index
      %46 = vector.load %arg8[%c0_21, %c0_22, %c0_23] : memref<1x8x128xf32, #tpu.memory_space<vmem>>, vector<1x8x128xf32>
      %47 = vector.shape_cast %46 : vector<1x8x128xf32> to vector<8x128xf32>
      %48 = vector.shape_cast %45 : vector<8x128xf32> to vector<1x8x128xf32>
      tpu.vector_store %arg8[%c0_21, %c0_22, %c0_23], %48 {strides = array<i32>} : memref<1x8x128xf32, #tpu.memory_space<vmem>>, vector<1x8x128xf32>,
      %49 = vector.extract_strided_slice %45 {offsets = [0, 16], sizes = [8, 1], strides = [1, 1]} : vector<8x128xf32> to vector<8x1xf32>
      %50 = vector.extract_strided_slice %45 {offsets = [0, 17], sizes = [8, 1], strides = [1, 1]} : vector<8x128xf32> to vector<8x1xf32>
      %51 = vector.extract_strided_slice %45 {offsets = [0, 18], sizes = [8, 1], strides = [1, 1]} : vector<8x128xf32> to vector<8x1xf32>
      %52 = vector.extract_strided_slice %45 {offsets = [0, 19], sizes = [8, 1], strides = [1, 1]} : vector<8x128xf32> to vector<8x1xf32>
      %53 = arith.index_cast %arg0 : i32 to index
      %c0_24 = arith.constant 0 : index
      %54 = memref.load %arg2[%53, %c0_24] : memref<2x2xf32, #tpu.memory_space<smem>>
      %55 = arith.index_cast %arg0 : i32 to index
      %c1 = arith.constant 1 : index
      %56 = memref.load %arg2[%55, %c1] : memref<2x2xf32, #tpu.memory_space<smem>>
      %cst_25 = arith.constant 5.000000e-01 : f32
      %57 = vector.broadcast %cst_25 : f32 to vector<8x1xf32>
      %58 = arith.mulf %57, %51 : vector<8x1xf32>
      %59 = arith.subf %49, %58 : vector<8x1xf32>
      %60 = vector.broadcast %54 : f32 to vector<8x1xf32>
      %61 = arith.mulf %59, %60 : vector<8x1xf32>
      %cst_26 = arith.constant 5.000000e-01 : f32
      %62 = vector.broadcast %cst_26 : f32 to vector<8x1xf32>
      %63 = arith.mulf %62, %52 : vector<8x1xf32>
      %64 = arith.subf %50, %63 : vector<8x1xf32>
      %65 = vector.broadcast %56 : f32 to vector<8x1xf32>
      %66 = arith.mulf %64, %65 : vector<8x1xf32>
      %cst_27 = arith.constant 5.000000e-01 : f32
      %67 = vector.broadcast %cst_27 : f32 to vector<8x1xf32>
      %68 = arith.mulf %67, %51 : vector<8x1xf32>
      %69 = arith.addf %49, %68 : vector<8x1xf32>
      %70 = vector.broadcast %54 : f32 to vector<8x1xf32>
      %71 = arith.mulf %69, %70 : vector<8x1xf32>
      %cst_28 = arith.constant 5.000000e-01 : f32
      %72 = vector.broadcast %cst_28 : f32 to vector<8x1xf32>
      %73 = arith.mulf %72, %52 : vector<8x1xf32>
      %74 = arith.addf %50, %73 : vector<8x1xf32>
      %75 = vector.broadcast %56 : f32 to vector<8x1xf32>
      %76 = arith.mulf %74, %75 : vector<8x1xf32>
      %77 = tpu.concatenate %61, %66, %71, %76 in 1 : vector<8x1xf32>, vector<8x1xf32>, vector<8x1xf32>, vector<8x1xf32> -> vector<8x4xf32>
      %c0_29 = arith.constant 0 : index
      %c0_30 = arith.constant 0 : index
      %c0_31 = arith.constant 0 : index
      %78 = vector.load %arg9[%c0_29, %c0_30, %c0_31] : memref<1x8x4xf32, #tpu.memory_space<vmem>>, vector<1x8x4xf32>
      %79 = vector.shape_cast %78 : vector<1x8x4xf32> to vector<8x4xf32>
      %80 = vector.shape_cast %77 : vector<8x4xf32> to vector<1x8x4xf32>
      tpu.vector_store %arg9[%c0_29, %c0_30, %c0_31], %80 {strides = array<i32>} : memref<1x8x4xf32, #tpu.memory_space<vmem>>, vector<1x8x4xf32>,
    } else {
    }
    return
  }
  func.func @transform_0(%arg0: i32, %arg1: i32) -> (i32, i32) {
    %c0_i32 = arith.constant 0 : i32
    %c0_i32_0 = arith.constant 0 : i32
    %c0_i32_1 = arith.constant 0 : i32
    return %c0_i32, %c0_i32_0 : i32, i32
  }
  func.func @transform_1(%arg0: i32, %arg1: i32) -> (i32, i32, i32) {
    %c0_i32 = arith.constant 0 : i32
    %c0_i32_0 = arith.constant 0 : i32
    return %arg0, %c0_i32, %arg1 : i32, i32, i32
  }
  func.func @transform_2(%arg0: i32, %arg1: i32) -> (i32, i32) {
    %c0_i32 = arith.constant 0 : i32
    %c0_i32_0 = arith.constant 0 : i32
    %c0_i32_1 = arith.constant 0 : i32
    return %c0_i32, %c0_i32_0 : i32, i32
  }
  func.func @transform_3(%arg0: i32, %arg1: i32) -> (i32, i32) {
    %c0_i32 = arith.constant 0 : i32
    %c0_i32_0 = arith.constant 0 : i32
    return %c0_i32, %arg1 : i32, i32
  }
  func.func @transform_4(%arg0: i32, %arg1: i32) -> (i32, i32) {
    %c0_i32 = arith.constant 0 : i32
    %c0_i32_0 = arith.constant 0 : i32
    %c0_i32_1 = arith.constant 0 : i32
    return %c0_i32, %c0_i32_0 : i32, i32
  }
  func.func @transform_5(%arg0: i32, %arg1: i32) -> (i32, i32) {
    %c0_i32 = arith.constant 0 : i32
    %c0_i32_0 = arith.constant 0 : i32
    %c0_i32_1 = arith.constant 0 : i32
    return %c0_i32, %c0_i32_0 : i32, i32
  }
  func.func @transform_6(%arg0: i32, %arg1: i32) -> (i32, i32, i32) {
    %c0_i32 = arith.constant 0 : i32
    %c0_i32_0 = arith.constant 0 : i32
    %c0_i32_1 = arith.constant 0 : i32
    return %arg0, %c0_i32, %c0_i32_0 : i32, i32, i32
  }
  func.func @transform_7(%arg0: i32, %arg1: i32) -> (i32, i32, i32) {
    %c0_i32 = arith.constant 0 : i32
    %c0_i32_0 = arith.constant 0 : i32
    %c0_i32_1 = arith.constant 0 : i32
    return %arg0, %c0_i32, %c0_i32_0 : i32, i32, i32
  }
}

</mosaic_0001>

<llo_original>
// kernel: _lambda_.1
$region0: #{_lambda_.1}
  #allocation0 [shape = 'u32[]', space=smem, size = 0x4, offset = 0x4, fixed_abs, tag = 'smem constant byte address 0x4 - core index']
  #allocation1 [shape = 'u32[144,128]{1,0:T(1,128)}', space=vmem, size = 0x12000, scoped, tag = 'internal scratch']
  #allocation2 [shape = 'f32[8,32]{1,0:T(8,128)}', space=vmem, size = 0x1000, scoped, tag = 'scratch operand']
  %s0 = inlined_call_operand.vmem [shape: f32[2,2], index: 0, kind: input, shape index: {}]
  %s1 = inlined_call_operand.vmem [shape: f32[2,3,256], index: 1, kind: input, shape index: {}]
  %s2 = inlined_call_operand.vmem [shape: f32[32,3], index: 2, kind: input, shape index: {}]
  %s3 = inlined_call_operand.vmem [shape: bf16[8,256], index: 3, kind: input, shape index: {}]
  %s4 = inlined_call_operand.vmem [shape: bf16[32,128], index: 4, kind: input, shape index: {}]
  %s5 = inlined_call_operand.vmem [shape: f32[1,128], index: 5, kind: input, shape index: {}]
  %s6 = inlined_call_operand.vmem [shape: f32[2,8,128], index: 6, kind: output, shape index: {0}]
  %s7 = inlined_call_operand.vmem [shape: f32[2,8,4], index: 7, kind: output, shape index: {1}]
  %8 = xla_tuple %s6, %s7
  %s9 = sld [smem:[#allocation0]]
  $region77: #{_lambda_.1} parent=0
    _
  %s11 = ssub.s32 1, %s9
  %s12 = scalar_select 0, %s11, %s9
  $region1: #{_lambda_.1} parent=0
    #allocation3 [shape = 'u8[1024]{0}', space=smem, size = 0x400, scoped, tag = 'input window, operand 0, single buffered']
    #allocation4 [shape = 's32[2]{0}', space=sflag, size = 0x8, scoped, tag = 'scoped memory for _lambda_.1']
    %13 = vsyncpa [#allocation4], 0
    loop: start=0, step=1, limit=6
    $region2: #{_lambda_.1} parent=1 // loop_pre_header
      _
    $region3: #{_lambda_.1} parent=1 // loop_header
      %s15 = sphi 0, %s19
      %p16 = scmp.ge.s32.totalorder %s15, 6
      %s22 = sphi 0, %s34
      %s23 = sphi 0, %s30
      %s24 = sphi 0, %s22
      %s25 = sphi 0, %s23
      %s26 = sphi 0, %s24
      %s27 = sphi 0, %s25
      %s35 = sphi 0, %s35
      %s37 = sphi 0, %s35
      %s38 = sphi 0, %s37
      %s52 = sphi 0, %s38
      %s60 = sphi 0, %s62
      %s63 = sphi 0, %s60
      %s64 = sphi 0, %s63
      %s80 = sphi 0, %s64
      %s84 = sphi 0, %s84
      %s86 = sphi 0, %s84
      %s87 = sphi 0, %s86
      %s101 = sphi 0, %s87
      %s107 = sphi 0, %s109
      %s110 = sphi 0, %s107
      %s111 = sphi 0, %s110
      %s127 = sphi 0, %s111
      %s131 = sphi 0, %s131
      %s133 = sphi 0, %s131
      %s134 = sphi 0, %s133
      %s148 = sphi 0, %s134
      %s152 = sphi 0, %s152
      %s154 = sphi 0, %s152
      %s155 = sphi 0, %s154
      %s169 = sphi 0, %s155
      %s175 = sphi 0, %s177
      %s178 = sphi 0, %s175
      %s179 = sphi 0, %s178
      %s195 = sphi 0, %s179
      %s201 = sphi 0, %s203
      %s204 = sphi 0, %s201
      %s205 = sphi 0, %s204
      %s221 = sphi 0, %s205
    $region4: #{_lambda_.1} parent=1 // loop_header_branch
      %18 = sbr.rel (%p16) target = $region8
    $region5: #{_lambda_.1} parent=1 // loop_body
      %s20 = ssub.s32 %s15, 1
      %s21 = ssub.s32 %s15, 2
      %s28 = sadd.s32 1, %s23
      %p29 = scmp.ge.s32.totalorder %s28, 2
      %s30 = scalar_select %p29, 0, %s28
      %s31 = sadd.s32 1, %s22
      %s32 = scalar_select %p29, %s31, %s22
      %p33 = scmp.ge.s32.totalorder %s32, 2
      %s34 = scalar_select %p33, 0, %s32
      %s36 = sadd.s32 %s35, 1
      %p39 = scmp.eq.s32.totalorder %s15, 3
      %p40 = scmp.ne.s32.totalorder %s35, %s37
      %p41 = scmp.eq.s32.totalorder %s15, 0
      %p42 = por %p40, %p41
      %p43 = scmp.ne.s32.totalorder %s35, %s37
      %p44 = scmp.eq.s32.totalorder %s20, 3
      %p45 = por %p43, %p44
      %p46 = scmp.ne.s32.totalorder %s37, %s38
      %p47 = scmp.eq.s32.totalorder %s20, 0
      %p48 = por %p46, %p47
      %p49 = scmp.ne.s32.totalorder %s37, %s38
      %p50 = scmp.eq.s32.totalorder %s21, 3
      %p51 = por %p49, %p50
      %p53 = scmp.ne.s32.totalorder %s38, %s52
      %p54 = scmp.eq.s32.totalorder %s21, 0
      %p55 = por %p53, %p54
      %s56 = ssub.s32 %s22, %s34
      %s57 = ssub.s32 %s23, %s30
      %s58 = sor.u32 %s56, %s57
      %p59 = scmp.eq.s32.totalorder %s58, 0
      %s61 = sadd.s32 %s60, 1
      %s62 = scalar_select %p59, %s60, %s61
      %p65 = pneg %p59
      %p66 = scmp.eq.s32.totalorder %s15, 3
      %p67 = por %p65, %p66
      %p68 = scmp.ne.s32.totalorder %s60, %s63
      %p69 = scmp.eq.s32.totalorder %s15, 0
      %p70 = por %p68, %p69
      %p71 = scmp.ne.s32.totalorder %s60, %s63
      %p72 = scmp.eq.s32.totalorder %s20, 3
      %p73 = por %p71, %p72
      %p74 = scmp.ne.s32.totalorder %s63, %s64
      %p75 = scmp.eq.s32.totalorder %s20, 0
      %p76 = por %p74, %p75
      %p77 = scmp.ne.s32.totalorder %s63, %s64
      %p78 = scmp.eq.s32.totalorder %s21, 3
      %p79 = por %p77, %p78
      %p81 = scmp.ne.s32.totalorder %s64, %s80
      %p82 = scmp.eq.s32.totalorder %s21, 0
      %p83 = por %p81, %p82
      %s85 = sadd.s32 %s84, 1
      %p88 = scmp.eq.s32.totalorder %s15, 3
      %p89 = scmp.ne.s32.totalorder %s84, %s86
      %p90 = scmp.eq.s32.totalorder %s15, 0
      %p91 = por %p89, %p90
      %p92 = scmp.ne.s32.totalorder %s84, %s86
      %p93 = scmp.eq.s32.totalorder %s20, 3
      %p94 = por %p92, %p93
      %p95 = scmp.ne.s32.totalorder %s86, %s87
      %p96 = scmp.eq.s32.totalorder %s20, 0
      %p97 = por %p95, %p96
      %p98 = scmp.ne.s32.totalorder %s86, %s87
      %p99 = scmp.eq.s32.totalorder %s21, 3
      %p100 = por %p98, %p99
      %p102 = scmp.ne.s32.totalorder %s87, %s101
      %p103 = scmp.eq.s32.totalorder %s21, 0
      %p104 = por %p102, %p103
      %s105 = ssub.s32 %s23, %s30
      %p106 = scmp.eq.s32.totalorder %s105, 0
      %s108 = sadd.s32 %s107, 1
      %s109 = scalar_select %p106, %s107, %s108
      %p112 = pneg %p106
      %p113 = scmp.eq.s32.totalorder %s15, 3
      %p114 = por %p112, %p113
      %p115 = scmp.ne.s32.totalorder %s107, %s110
      %p116 = scmp.eq.s32.totalorder %s15, 0
      %p117 = por %p115, %p116
      %p118 = scmp.ne.s32.totalorder %s107, %s110
      %p119 = scmp.eq.s32.totalorder %s20, 3
      %p120 = por %p118, %p119
      %p121 = scmp.ne.s32.totalorder %s110, %s111
      %p122 = scmp.eq.s32.totalorder %s20, 0
      %p123 = por %p121, %p122
      %p124 = scmp.ne.s32.totalorder %s110, %s111
      %p125 = scmp.eq.s32.totalorder %s21, 3
      %p126 = por %p124, %p125
      %p128 = scmp.ne.s32.totalorder %s111, %s127
      %p129 = scmp.eq.s32.totalorder %s21, 0
      %p130 = por %p128, %p129
      %s132 = sadd.s32 %s131, 1
      %p135 = scmp.eq.s32.totalorder %s15, 3
      %p136 = scmp.ne.s32.totalorder %s131, %s133
      %p137 = scmp.eq.s32.totalorder %s15, 0
      %p138 = por %p136, %p137
      %p139 = scmp.ne.s32.totalorder %s131, %s133
      %p140 = scmp.eq.s32.totalorder %s20, 3
      %p141 = por %p139, %p140
      %p142 = scmp.ne.s32.totalorder %s133, %s134
      %p143 = scmp.eq.s32.totalorder %s20, 0
      %p144 = por %p142, %p143
      %p145 = scmp.ne.s32.totalorder %s133, %s134
      %p146 = scmp.eq.s32.totalorder %s21, 3
      %p147 = por %p145, %p146
      %p149 = scmp.ne.s32.totalorder %s134, %s148
      %p150 = scmp.eq.s32.totalorder %s21, 0
      %p151 = por %p149, %p150
      %s153 = sadd.s32 %s152, 1
      %p156 = scmp.eq.s32.totalorder %s15, 3
      %p157 = scmp.ne.s32.totalorder %s152, %s154
      %p158 = scmp.eq.s32.totalorder %s15, 0
      %p159 = por %p157, %p158
      %p160 = scmp.ne.s32.totalorder %s152, %s154
      %p161 = scmp.eq.s32.totalorder %s20, 3
      %p162 = por %p160, %p161
      %p163 = scmp.ne.s32.totalorder %s154, %s155
      %p164 = scmp.eq.s32.totalorder %s20, 0
      %p165 = por %p163, %p164
      %p166 = scmp.ne.s32.totalorder %s154, %s155
      %p167 = scmp.eq.s32.totalorder %s21, 3
      %p168 = por %p166, %p167
      %p170 = scmp.ne.s32.totalorder %s155, %s169
      %p171 = scmp.eq.s32.totalorder %s21, 0
      %p172 = por %p170, %p171
      %s173 = ssub.s32 %s22, %s34
      %p174 = scmp.eq.s32.totalorder %s173, 0
      %s176 = sadd.s32 %s175, 1
      %s177 = scalar_select %p174, %s175, %s176
      %p180 = pneg %p174
      %p181 = scmp.eq.s32.totalorder %s15, 3
      %p182 = por %p180, %p181
      %p183 = scmp.ne.s32.totalorder %s175, %s178
      %p184 = scmp.eq.s32.totalorder %s15, 0
      %p185 = por %p183, %p184
      %p186 = scmp.ne.s32.totalorder %s175, %s178
      %p187 = scmp.eq.s32.totalorder %s20, 3
      %p188 = por %p186, %p187
      %p189 = scmp.ne.s32.totalorder %s178, %s179
      %p190 = scmp.eq.s32.totalorder %s20, 0
      %p191 = por %p189, %p190
      %p192 = scmp.ne.s32.totalorder %s178, %s179
      %p193 = scmp.eq.s32.totalorder %s21, 3
      %p194 = por %p192, %p193
      %p196 = scmp.ne.s32.totalorder %s179, %s195
      %p197 = scmp.eq.s32.totalorder %s21, 0
      %p198 = por %p196, %p197
      %s199 = ssub.s32 %s22, %s34
      %p200 = scmp.eq.s32.totalorder %s199, 0
      %s202 = sadd.s32 %s201, 1
      %s203 = scalar_select %p200, %s201, %s202
      %p206 = pneg %p200
      %p207 = scmp.eq.s32.totalorder %s15, 3
      %p208 = por %p206, %p207
      %p209 = scmp.ne.s32.totalorder %s201, %s204
      %p210 = scmp.eq.s32.totalorder %s15, 0
      %p211 = por %p209, %p210
      %p212 = scmp.ne.s32.totalorder %s201, %s204
      %p213 = scmp.eq.s32.totalorder %s20, 3
      %p214 = por %p212, %p213
      %p215 = scmp.ne.s32.totalorder %s204, %s205
      %p216 = scmp.eq.s32.totalorder %s20, 0
      %p217 = por %p215, %p216
      %p218 = scmp.ne.s32.totalorder %s204, %s205
      %p219 = scmp.eq.s32.totalorder %s21, 3
      %p220 = por %p218, %p219
      %p222 = scmp.ne.s32.totalorder %s205, %s221
      %p223 = scmp.eq.s32.totalorder %s21, 0
      %p224 = por %p222, %p223
      %p225 = scmp.le.s32.totalorder 1, %s15
      %p226 = scmp.lt.s32.totalorder %s15, 5
      %p227 = pnand %p225, %p226
      %p228 = pneg %p227
      // Predicated region
      $region9: #{_lambda_.1} parent=5 // pred_check
        _
      $region10: #{_lambda_.1} parent=5 // pred_check_branch
        %230 = sbr.rel (%p227) target = $region12
      $region11: #{_lambda_.1} parent=5 // pred_region
        %s231 = ssub.s32 %s15, 1
        // Predicated region
        $region13: #{_lambda_.1} parent=11 // pred_check
          %p232 = pneg %p48
        $region14: #{_lambda_.1} parent=11 // pred_check_branch
          %234 = sbr.rel (%p232) target = $region16
        $region15: #{_lambda_.1} parent=11 // pred_region
          %s236 = ssub.s32 32, 32
          %237 = vsyncadd [#allocation4], %s236
          %s239 = sshll.u32 %s0, 4
          %s240 = int_to_ptr.vmem [resolvable:$true] %s239
          %242 = dma.vmem_to_smem %s240, 32, [#allocation3], [#allocation4]
        $region16: #{_lambda_.1} parent=11 // pred_fallthru
          _
        // Predicated region
        $region17: #{_lambda_.1} parent=11 // pred_check
          %p243 = pneg %p97
        $region18: #{_lambda_.1} parent=11 // pred_check_branch
          %245 = sbr.rel (%p243) target = $region20
        $region19: #{_lambda_.1} parent=11 // pred_region
          _
        $region20: #{_lambda_.1} parent=11 // pred_fallthru
          _
        // Predicated region
        $region21: #{_lambda_.1} parent=11 // pred_check
          %p246 = pneg %p144
        $region22: #{_lambda_.1} parent=11 // pred_check_branch
          %248 = sbr.rel (%p246) target = $region24
        $region23: #{_lambda_.1} parent=11 // pred_region
          _
        $region24: #{_lambda_.1} parent=11 // pred_fallthru
          _
        // Predicated region
        $region25: #{_lambda_.1} parent=11 // pred_check
          %p249 = pneg %p165
        $region26: #{_lambda_.1} parent=11 // pred_check_branch
          %251 = sbr.rel (%p249) target = $region28
        $region27: #{_lambda_.1} parent=11 // pred_region
          _
        $region28: #{_lambda_.1} parent=11 // pred_fallthru
          _
      $region12: #{_lambda_.1} parent=5 // pred_fallthru
        _
      %p252 = scmp.lt.s32.totalorder %s15, 4
      // Predicated region
      $region29: #{_lambda_.1} parent=5 // pred_check
        %p253 = pneg %p252
      $region30: #{_lambda_.1} parent=5 // pred_check_branch
        %255 = sbr.rel (%p253) target = $region32
      $region31: #{_lambda_.1} parent=5 // pred_region
        // Predicated region
        $region33: #{_lambda_.1} parent=31 // pred_check
          %p256 = pneg %p70
        $region34: #{_lambda_.1} parent=31 // pred_check_branch
          %258 = sbr.rel (%p256) target = $region36
        $region35: #{_lambda_.1} parent=31 // pred_region
          %p259 = scmp.lt.s32.totalorder %s22, 1
          %s260 = scalar_select %p259, %s22, 1
          %p261 = scmp.lt.s32.totalorder %s23, 1
          %s262 = scalar_select %p261, %s23, 1
          %s263 = smul.addr %s260, 2
          %s264 = sadd.s32 %s262, %s263
          %s265 = smul.addr %s264, 4
          %s266 = scalar_lea.vmem %s1, %s265
        $region36: #{_lambda_.1} parent=31 // pred_fallthru
          _
        // Predicated region
        $region37: #{_lambda_.1} parent=31 // pred_check
          %p267 = pneg %p117
        $region38: #{_lambda_.1} parent=31 // pred_check_branch
          %269 = sbr.rel (%p267) target = $region40
        $region39: #{_lambda_.1} parent=31 // pred_region
          %p270 = scmp.lt.s32.totalorder %s23, 1
          %s271 = scalar_select %p270, %s23, 1
          %s272 = smul.addr %s271, 4
          %s273 = scalar_lea.vmem %s3, %s272
        $region40: #{_lambda_.1} parent=31 // pred_fallthru
          _
      $region32: #{_lambda_.1} parent=5 // pred_fallthru
        _
      %p274 = scmp.le.s32.totalorder 1, %s15
      %p275 = scmp.lt.s32.totalorder %s15, 5
      %p276 = pnand %p274, %p275
      %p277 = pneg %p276
      // Predicated region
      $region41: #{_lambda_.1} parent=5 // pred_check
        _
      $region42: #{_lambda_.1} parent=5 // pred_check_branch
        %279 = sbr.rel (%p276) target = $region44
      $region43: #{_lambda_.1} parent=5 // pred_region
        %s280 = ssub.s32 %s15, 1
        // Predicated region
        $region45: #{_lambda_.1} parent=43 // pred_check
          %p281 = pneg %p48
        $region46: #{_lambda_.1} parent=43 // pred_check_branch
          %283 = sbr.rel (%p281) target = $region48
        $region47: #{_lambda_.1} parent=43 // pred_region
          %284 = dma.done [#allocation4], 32
        $region48: #{_lambda_.1} parent=43 // pred_fallthru
          _
        %285 = sfence
        %p286 = pneg %p48
        %p287 = pneg %p45
        %p288 = scmp.lt.s32.totalorder %s24, 1
        %s289 = scalar_select %p288, %s24, 1
        %p290 = scmp.lt.s32.totalorder %s25, 1
        %s291 = scalar_select %p290, %s25, 1
        %s292 = smul.addr %s289, 2
        %s293 = sadd.s32 %s291, %s292
        %s294 = smul.addr %s293, 4
        %s295 = scalar_lea.vmem %s1, %s294
        %p296 = pneg %p76
        %p297 = pneg %p73
        %p298 = pneg %p97
        %p299 = pneg %p94
        %p300 = scmp.lt.s32.totalorder %s25, 1
        %s301 = scalar_select %p300, %s25, 1
        %s302 = smul.addr %s301, 4
        %s303 = scalar_lea.vmem %s3, %s302
        %p304 = pneg %p123
        %p305 = pneg %p120
        %p306 = pneg %p144
        %p307 = pneg %p141
        %p308 = pneg %p165
        %p309 = pneg %p162
        %p310 = pneg %p191
        %p311 = pneg %p188
        %p312 = scmp.lt.s32.totalorder %s24, 1
        %s313 = scalar_select %p312, %s24, 1
        %s314 = smul.addr %s313, 8
        %s315 = scalar_lea.vmem %s6, %s314
        %p316 = pneg %p217
        %p317 = pneg %p214
        %p318 = scmp.lt.s32.totalorder %s24, 1
        %s319 = scalar_select %p318, %s24, 1
        %s320 = smul.addr %s319, 8
        %s321 = scalar_lea.vmem %s7, %s320
        %p322 = scmp.lt.s32.totalorder %s24, 1
        %s323 = scalar_select %p322, %s24, 1
        %p324 = scmp.lt.s32.totalorder %s25, 1
        %s325 = scalar_select %p324, %s25, 1
        %s326 = smul.addr %s323, 2
        %s327 = sadd.s32 %s325, %s326
        %s328 = smul.addr %s327, 4
        %s329 = scalar_lea.vmem %s1, %s328
        %p330 = scmp.lt.s32.totalorder %s25, 1
        %s331 = scalar_select %p330, %s25, 1
        %s332 = smul.addr %s331, 4
        %s333 = scalar_lea.vmem %s3, %s332
        %p334 = scmp.lt.s32.totalorder %s24, 1
        %s335 = scalar_select %p334, %s24, 1
        %s336 = smul.addr %s335, 8
        %s337 = scalar_lea.vmem %s6, %s336
        %p338 = scmp.lt.s32.totalorder %s24, 1
        %s339 = scalar_select %p338, %s24, 1
        %s340 = smul.addr %s339, 8
        %s341 = scalar_lea.vmem %s7, %s340
        %p343 = scmp.eq.s32.totalorder %s25, 0
        // Predicated region
        $region49: #{_lambda_.1} parent=43 // pred_check
          %p344 = pneg %p343
        $region50: #{_lambda_.1} parent=43 // pred_check_branch
          %346 = sbr.rel (%p344) target = $region52
        $region51: #{_lambda_.1} parent=43 // pred_region
          %vm347 = vcmask 261120
          %348 = vst.msk [vmem:[#allocation2] sm:$0xff] %vm347, 0.0
        $region52: #{_lambda_.1} parent=43 // pred_fallthru
          _
        %v349 = vld [vmem:[%s329] sm:$0x7]
        %v350 = vld [vmem:[%s2] sm:$0xff]
        %v351 = vld [vmem:[%s2 + $0x8] sm:$0xff]
        %v352 = vld [vmem:[%s2 + $0x10] sm:$0xff]
        %v353 = vld [vmem:[%s2 + $0x18] sm:$0xff]
        %355 = vset.pattern.permute.xlu0 0
        %356 = vperm.xlu0 %355, %v350
        %v357 = vpop.permute.xlu0 %356
        %360 = vset.pattern.permute.xlu0 0
        %361 = vperm.xlu0 %360, %v351
        %v362 = vpop.permute.xlu0 %361
        %365 = vset.pattern.permute.xlu0 0
        %366 = vperm.xlu0 %365, %v352
        %v367 = vpop.permute.xlu0 %366
        %370 = vset.pattern.permute.xlu0 0
        %371 = vperm.xlu0 %370, %v353
        %v372 = vpop.permute.xlu0 %371
        %v374 = vlaneseq
        %v375 = vshrl.u32 %v374, 7
        %v376 = vsub.s32 0, %v375
        %v377 = vrot.slane %v349, %v376
        %v378 = vmul.f32 %v357, %v377
        %v379 = vmul.f32 %v362, %v377
        %v380 = vmul.f32 %v367, %v377
        %v381 = vmul.f32 %v372, %v377
        %382 = vset.pattern.permute.xlu0 1
        %383 = vperm.xlu0 %382, %v350
        %v384 = vpop.permute.xlu0 %383
        %386 = vset.pattern.permute.xlu0 1
        %387 = vperm.xlu0 %386, %v351
        %v388 = vpop.permute.xlu0 %387
        %390 = vset.pattern.permute.xlu0 1
        %391 = vperm.xlu0 %390, %v352
        %v392 = vpop.permute.xlu0 %391
        %394 = vset.pattern.permute.xlu0 1
        %395 = vperm.xlu0 %394, %v353
        %v396 = vpop.permute.xlu0 %395
        %v398 = vlaneseq
        %v399 = vshrl.u32 %v398, 7
        %v400 = vsub.s32 1, %v399
        %v401 = vrot.slane %v349, %v400
        %v402 = vmul.f32 %v384, %v401
        %v403 = vmul.f32 %v388, %v401
        %v404 = vmul.f32 %v392, %v401
        %v405 = vmul.f32 %v396, %v401
        %v406 = vadd.f32 %v378, %v402
        %v407 = vadd.f32 %v379, %v403
        %v408 = vadd.f32 %v380, %v404
        %v409 = vadd.f32 %v381, %v405
        %410 = vset.pattern.permute.xlu0 2
        %411 = vperm.xlu0 %410, %v350
        %v412 = vpop.permute.xlu0 %411
        %414 = vset.pattern.permute.xlu0 2
        %415 = vperm.xlu0 %414, %v351
        %v416 = vpop.permute.xlu0 %415
        %418 = vset.pattern.permute.xlu0 2
        %419 = vperm.xlu0 %418, %v352
        %v420 = vpop.permute.xlu0 %419
        %422 = vset.pattern.permute.xlu0 2
        %423 = vperm.xlu0 %422, %v353
        %v424 = vpop.permute.xlu0 %423
        %v426 = vlaneseq
        %v427 = vshrl.u32 %v426, 7
        %v428 = vsub.s32 2, %v427
        %v429 = vrot.slane %v349, %v428
        %v430 = vmul.f32 %v412, %v429
        %v431 = vmul.f32 %v416, %v429
        %v432 = vmul.f32 %v420, %v429
        %v433 = vmul.f32 %v424, %v429
        %v434 = vadd.f32 %v406, %v430
        %v435 = vadd.f32 %v407, %v431
        %v436 = vadd.f32 %v408, %v432
        %v437 = vadd.f32 %v409, %v433
        %v438 = vmax.f32 %v434, 0.0
        %v439 = vmax.f32 %v435, 0.0
        %v440 = vmax.f32 %v436, 0.0
        %v441 = vmax.f32 %v437, 0.0
        %v442 = vld [vmem:[#allocation2] sm:$0xff]
        %v443 = vld [vmem:[%s333] sm:$0xf]
        %v444 = vpack.c.bf16 %v439, %v438
        %v445 = vpack.c.bf16 %v441, %v440
        %446 = vmatprep.subr.bf16.mxu0 0
        %447 = vmatpush1.bf16.xpose.msra.mxu0 %v444
        %448 = vmatprep.subr.bf16.mxu0 0
        %449 = vmatpush1.bf16.xpose.msra.mxu0 %v445
        %450 = vmatprep.subr.bf16.mxu0 0
        %451 = vmatpush1.bf16.xpose.msra.mxu0 0
        %452 = vmatprep.subr.bf16.mxu0 0
        %453 = vmatpush1.bf16.xpose.msra.mxu0 0
        %454 = vmatprep.subr.bf16.mxu0 0
        %455 = vmatpush1.bf16.xpose.msra.mxu0 0
        %456 = vmatprep.subr.bf16.mxu0 0
        %457 = vmatpush1.bf16.xpose.msra.mxu0 0
        %458 = vmatprep.subr.bf16.mxu0 0
        %459 = vmatpush1.bf16.xpose.msra.mxu0 0
        %460 = vmatprep.subr.bf16.mxu0 0
        %461 = vmatpush1.bf16.xpose.msra.mxu0 0
        %462 = vmatprep.subr.bf16.mxu0 0
        %463 = vmatpush1.bf16.xpose.msra.mxu0 0
        %464 = vmatprep.subr.bf16.mxu0 0
        %465 = vmatpush1.bf16.xpose.msra.mxu0 0
        %466 = vmatprep.subr.bf16.mxu0 0
        %467 = vmatpush1.bf16.xpose.msra.mxu0 0
        %468 = vmatprep.subr.bf16.mxu0 0
        %469 = vmatpush1.bf16.xpose.msra.mxu0 0
        %470 = vmatprep.subr.bf16.mxu0 0
        %471 = vmatpush1.bf16.xpose.msra.mxu0 0
        %472 = vmatprep.subr.bf16.mxu0 0
        %473 = vmatpush1.bf16.xpose.msra.mxu0 0
        %474 = vmatprep.subr.bf16.mxu0 0
        %475 = vmatpush1.bf16.xpose.msra.mxu0 0
        %476 = vmatprep.subr.bf16.mxu0 0
        %477 = vmatpush1.bf16.xpose.msra.mxu0 0
        %478 = vmatprep.mubr.bf16.mxu0 0
        %479 = vmatmul.mubr.bf16.gmra.mrb[0].mxu0 %v443
        %v480 = vpop.f32.mrb[0].mxu0
        %v481 = vadd.f32 0.0, %v480
        %v482 = vpop.f32.mrb[0].mxu0
        %v483 = vpop.f32.mrb[0].mxu0
        %v484 = vpop.f32.mrb[0].mxu0
        %485 = vdwg.mxu0
        %v486 = vadd.f32 %v442, %v481
        %vm487 = vcmask 261120
        %488 = vst.msk [vmem:[#allocation2] sm:$0xff] %vm487, %v486
        %p489 = scmp.eq.s32.totalorder %s25, 1
        // Predicated region
        $region53: #{_lambda_.1} parent=43 // pred_check
          %p490 = pneg %p489
        $region54: #{_lambda_.1} parent=43 // pred_check_branch
          %492 = sbr.rel (%p490) target = $region56
        $region55: #{_lambda_.1} parent=43 // pred_region
          %v493 = vld [vmem:[#allocation2] sm:$0xff]
          %v494 = vpack.c.bf16 %v493, %v493
          %v495 = vld [vmem:[%s4] sm:$0xf]
          %v496 = vld [vmem:[%s4 + $0x4] sm:$0xf]
          %v497 = vld [vmem:[%s4 + $0x8] sm:$0xf]
          %v498 = vld [vmem:[%s4 + $0xc] sm:$0xf]
          %v499 = vld [vmem:[%s5] sm:$0x1]
          %v501 = vlaneseq
          %v502 = vshrl.u32 %v501, 7
          %v503 = vsub.s32 0, %v502
          %v504 = vrot.slane %v499, %v503
          %v510 = vunpack.c.l.b16 %v495
          %v511 = vunpack.c.l.b16 %v496
          %v512 = vunpack.c.l.b16 %v497
          %v513 = vunpack.c.l.b16 %v498
          %v514 = vpack.c.b16 %v511, %v510
          %v515 = vpack.c.b16 %v513, %v512
          %v519 = vsel %vm487, %v494, 0
          %521 = vmatprep.subr.bf16.mxu0 0
          %522 = vmatpush1.bf16.msra.mxu0 %v514
          %523 = vmatprep.subr.bf16.mxu0 0
          %524 = vmatpush1.bf16.msra.mxu0 %v515
          %525 = vmatprep.subr.bf16.mxu0 0
          %526 = vmatpush1.bf16.msra.mxu0 0
          %527 = vmatprep.subr.bf16.mxu0 0
          %528 = vmatpush1.bf16.msra.mxu0 0
          %529 = vmatprep.subr.bf16.mxu0 0
          %530 = vmatpush1.bf16.msra.mxu0 0
          %531 = vmatprep.subr.bf16.mxu0 0
          %532 = vmatpush1.bf16.msra.mxu0 0
          %533 = vmatprep.subr.bf16.mxu0 0
          %534 = vmatpush1.bf16.msra.mxu0 0
          %535 = vmatprep.subr.bf16.mxu0 0
          %536 = vmatpush1.bf16.msra.mxu0 0
          %537 = vmatprep.subr.bf16.mxu0 0
          %538 = vmatpush1.bf16.msra.mxu0 0
          %539 = vmatprep.subr.bf16.mxu0 0
          %540 = vmatpush1.bf16.msra.mxu0 0
          %541 = vmatprep.subr.bf16.mxu0 0
          %542 = vmatpush1.bf16.msra.mxu0 0
          %543 = vmatprep.subr.bf16.mxu0 0
          %544 = vmatpush1.bf16.msra.mxu0 0
          %545 = vmatprep.subr.bf16.mxu0 0
          %546 = vmatpush1.bf16.msra.mxu0 0
          %547 = vmatprep.subr.bf16.mxu0 0
          %548 = vmatpush1.bf16.msra.mxu0 0
          %549 = vmatprep.subr.bf16.mxu0 0
          %550 = vmatpush1.bf16.msra.mxu0 0
          %551 = vmatprep.subr.bf16.mxu0 0
          %552 = vmatpush1.bf16.msra.mxu0 0
          %553 = vmatprep.mubr.bf16.mxu0 0
          %554 = vmatmul.mubr.bf16.gmra.mrb[0].mxu0 %v519
          %v555 = vpop.f32.mrb[0].mxu0
          %v556 = vadd.f32 %v504, %v555
          %v557 = vpop.f32.mrb[0].mxu0
          %v558 = vpop.f32.mrb[0].mxu0
          %v559 = vpop.f32.mrb[0].mxu0
          %560 = vdwg.mxu0
          %v561 = vxor.u32 %v556, 2147483648
          %v562 = vmul.f32 %v561, 1.442695
          %v563 = vpow.pop %v562
          %v564 = vadd.f32 %v563, 1.0
          %v565 = vrcp.pop %v564
          %v566 = vmul.f32 1.0, %v565
          %567 = vst [vmem:[%s337] sm:$0xff] %v566
          %s568 = smul.u32 %s24, 128
          %s569 = sld [smem:[#allocation3 + %s568]]
          %s570 = sadd.s32 %s568, 1
          %s571 = sld [smem:[#allocation3 + %s570]]
          %v572 = vmul.f32 %v566, 0.5
          %574 = vrot.lane.b32.xlu0 %v572, 126
          %v575 = vpop.permute.xlu0 %574
          %v577 = vsub.f32 %v566, %v575
          %v578 = vstv %s569
          %v579 = vmul.f32 %v577, %v578
          %v580 = vstv %s571
          %v581 = vmul.f32 %v577, %v580
          %v582 = vadd.f32 %v566, %v575
          %v583 = vmul.f32 %v582, %v578
          %v584 = vmul.f32 %v582, %v580
          %586 = vrot.lane.b32.xlu0 %v579, 112
          %v587 = vpop.permute.xlu0 %586
          %590 = vrot.lane.b32.xlu0 %v581, 112
          %v591 = vpop.permute.xlu0 %590
          %594 = vrot.lane.b32.xlu0 %v583, 114
          %v595 = vpop.permute.xlu0 %594
          %598 = vrot.lane.b32.xlu0 %v584, 114
          %v599 = vpop.permute.xlu0 %598
          %vm601 = vcmask 7168
          %v602 = vsel %vm601, %v587, %v591
          %vm603 = vcmask 15360
          %v604 = vsel %vm603, %v602, %v595
          %vm605 = vcmask 23552
          %v606 = vsel %vm605, %v604, %v599
          %vm607 = vcmask 31744
          %608 = vst.msk [vmem:[%s341] sm:$0xff] %vm607, %v606
        $region56: #{_lambda_.1} parent=43 // pred_fallthru
          _
        %p609 = scmp.lt.s32.totalorder %s24, 1
        %s610 = scalar_select %p609, %s24, 1
        %s611 = smul.addr %s610, 8
        %s612 = scalar_lea.vmem %s6, %s611
        %p613 = scmp.lt.s32.totalorder %s24, 1
        %s614 = scalar_select %p613, %s24, 1
        %s615 = smul.addr %s614, 8
        %s616 = scalar_lea.vmem %s7, %s615
        // Predicated region
        $region57: #{_lambda_.1} parent=43 // pred_check
          %p617 = pneg %p188
        $region58: #{_lambda_.1} parent=43 // pred_check_branch
          %619 = sbr.rel (%p617) target = $region60
        $region59: #{_lambda_.1} parent=43 // pred_region
          _
        $region60: #{_lambda_.1} parent=43 // pred_fallthru
          _
        // Predicated region
        $region61: #{_lambda_.1} parent=43 // pred_check
          %p620 = pneg %p214
        $region62: #{_lambda_.1} parent=43 // pred_check_branch
          %622 = sbr.rel (%p620) target = $region64
        $region63: #{_lambda_.1} parent=43 // pred_region
          _
        $region64: #{_lambda_.1} parent=43 // pred_fallthru
          _
      $region44: #{_lambda_.1} parent=5 // pred_fallthru
        _
      %p623 = scmp.le.s32.totalorder 2, %s15
      // Predicated region
      $region65: #{_lambda_.1} parent=5 // pred_check
        %p624 = pneg %p623
      $region66: #{_lambda_.1} parent=5 // pred_check_branch
        %626 = sbr.rel (%p624) target = $region68
      $region67: #{_lambda_.1} parent=5 // pred_region
        %s627 = ssub.s32 %s15, 2
        // Predicated region
        $region69: #{_lambda_.1} parent=67 // pred_check
          %p628 = pneg %p194
        $region70: #{_lambda_.1} parent=67 // pred_check_branch
          %630 = sbr.rel (%p628) target = $region72
        $region71: #{_lambda_.1} parent=67 // pred_region
          %p631 = scmp.lt.s32.totalorder %s26, 1
          %s632 = scalar_select %p631, %s26, 1
          %s633 = smul.addr %s632, 8
          %s634 = scalar_lea.vmem %s6, %s633
        $region72: #{_lambda_.1} parent=67 // pred_fallthru
          _
        // Predicated region
        $region73: #{_lambda_.1} parent=67 // pred_check
          %p635 = pneg %p220
        $region74: #{_lambda_.1} parent=67 // pred_check_branch
          %637 = sbr.rel (%p635) target = $region76
        $region75: #{_lambda_.1} parent=67 // pred_region
          %p638 = scmp.lt.s32.totalorder %s26, 1
          %s639 = scalar_select %p638, %s26, 1
          %s640 = smul.addr %s639, 8
          %s641 = scalar_lea.vmem %s7, %s640
        $region76: #{_lambda_.1} parent=67 // pred_fallthru
          _
      $region68: #{_lambda_.1} parent=5 // pred_fallthru
        _
    $region6: #{_lambda_.1} parent=1 // loop_footer
      %s19 = sadd.s32 1, %s15
    $region7: #{_lambda_.1} parent=1 // loop_footer_branch
      %14 = sbr.rel target = $region3
    $region8: #{_lambda_.1} parent=1 // loop_exit
      _
    %642 = vsyncpa [#allocation4], 1
    %s643 = scalar_lea.sflag [#allocation4], 1
    %644 = vsyncpa %s643, 1

</llo_original>
